<compile_context>
chip_gen: v7x
topology: tpu7x:2x2x1
jax: 0.10.0
libtpu: 0.0.40
codegen_flags: <defaults>
</compile_context>

<pallas_src>
import functools

import jax
import jax.numpy as jnp
from jax import lax
from jax.experimental import pallas as pl
from jax.experimental.pallas import tpu as pltpu


# ---------------------------------------------------------------------------
# small helpers
# ---------------------------------------------------------------------------
def _ceil_div(a, b):
    return -(-a // b)


def _round_up(a, b):
    return _ceil_div(a, b) * b


def _pick_dim_tile(dim, pref, align=128):
    """Largest tile <= pref that divides `dim`; prefer multiples of 128, then 8.

    Never silently falls back to a huge full-dim block for the token axis — the
    token axis is padded in the layer wrapper instead.  Model dims (hidden,
    intermediate, head columns) are multiples of 128 for Qwen3.
    """
    pref = max(1, min(pref, dim))
    for a in (align, 8, 1):
        t = (pref // a) * a
        while t >= a:
            if dim % t == 0:
                return t
            t -= a
    return dim


def _token_tile(T):
    """Token-axis tile: 256 for long sequences, else ~T/2 rounded to 8 so the
    grid has >= 2 token tiles (keeps both TensorCores busy on megacore chips)."""
    if T >= 512:
        return 256
    return max(8, _round_up(_ceil_div(T, 2), 8))


def _vmem_limit_bytes():
    """Generation-aware VMEM budget: ~96 MiB on 128-MiB chips (v5e/v6e),
    ~44 MiB on 64-MiB chips (v7x)."""
    cap = 64 * 1024 * 1024
    try:
        info = pltpu.get_tpu_info()
        cap = int(getattr(info, "vmem_capacity_bytes", cap) or cap)
    except Exception:
        pass
    return int(min(max(cap - 20 * 1024 * 1024, 16 * 1024 * 1024), 96 * 1024 * 1024))


_VMEM_LIMIT = _vmem_limit_bytes()


# ---------------------------------------------------------------------------
# Tiled bf16 matmul (f32 accumulate)
# ---------------------------------------------------------------------------
def _matmul_kernel(x_ref, w_ref, o_ref, acc_ref):
    @pl.when(pl.program_id(2) == 0)
    def _():
        acc_ref[...] = jnp.zeros_like(acc_ref)

    acc_ref[...] += jnp.dot(x_ref[...], w_ref[...],
                            preferred_element_type=jnp.float32)

    @pl.when(pl.program_id(2) == pl.num_programs(2) - 1)
    def _():
        o_ref[...] = acc_ref[...].astype(o_ref.dtype)


def pallas_matmul(x, w, out_dtype=jnp.bfloat16, *, tm, tn=512, tk=1024):
    """x:[M,K] @ w:[K,N] -> [M,N]; w stored pre-transposed ([in, out])."""
    M, K = x.shape
    K2, N = w.shape
    assert K == K2 and M % tm == 0
    tn = _pick_dim_tile(N, tn)
    tk = _pick_dim_tile(K, tk)
    return pl.pallas_call(
        _matmul_kernel,
        out_shape=jax.ShapeDtypeStruct((M, N), out_dtype),
        grid=(M // tm, N // tn, K // tk),
        in_specs=[pl.BlockSpec((tm, tk), lambda i, j, k: (i, k)),
                  pl.BlockSpec((tk, tn), lambda i, j, k: (k, j))],
        out_specs=pl.BlockSpec((tm, tn), lambda i, j, k: (i, j)),
        scratch_shapes=[pltpu.VMEM((tm, tn), jnp.float32)],
        compiler_params=pltpu.CompilerParams(
            dimension_semantics=("parallel", "parallel", "arbitrary"),
            vmem_limit_bytes=_VMEM_LIMIT),
    )(x, w)


# ---------------------------------------------------------------------------
# o_proj matmul fused with residual add + RMSNorm (full-N accumulator)
# Emits (normed_hidden, new_residual), both bf16.
# ---------------------------------------------------------------------------
def _matmul_add_rmsnorm_kernel(x_ref, w_ref, r_ref, lw_ref, on_ref, nr_ref,
                               acc_ref, *, eps):
    k = pl.program_id(1)

    @pl.when(k == 0)
    def _():
        acc_ref[...] = jnp.zeros_like(acc_ref)

    acc_ref[...] += jnp.dot(x_ref[...], w_ref[...],
                            preferred_element_type=jnp.float32)

    @pl.when(k == pl.num_programs(1) - 1)
    def _():
        y = acc_ref[...] + r_ref[...].astype(jnp.float32)
        nr_ref[...] = y.astype(nr_ref.dtype)
        var = jnp.mean(y * y, axis=-1, keepdims=True)
        on_ref[...] = (y * lax.rsqrt(var + eps)
                       * lw_ref[...].astype(jnp.float32)).astype(on_ref.dtype)


def pallas_matmul_add_rmsnorm(x, w, residual, ln_w, eps, *, tm, tk=512):
    M, K = x.shape
    K2, N = w.shape
    assert K == K2 and residual.shape == (M, N) and M % tm == 0
    tk = _pick_dim_tile(K, tk)
    return pl.pallas_call(
        functools.partial(_matmul_add_rmsnorm_kernel, eps=eps),
        out_shape=(jax.ShapeDtypeStruct((M, N), jnp.bfloat16),
                   jax.ShapeDtypeStruct((M, N), jnp.bfloat16)),
        grid=(M // tm, K // tk),
        in_specs=[pl.BlockSpec((tm, tk), lambda i, k: (i, k)),
                  pl.BlockSpec((tk, N), lambda i, k: (k, 0)),
                  pl.BlockSpec((tm, N), lambda i, k: (i, 0)),
                  pl.BlockSpec((1, N), lambda i, k: (0, 0))],
        out_specs=(pl.BlockSpec((tm, N), lambda i, k: (i, 0)),
                   pl.BlockSpec((tm, N), lambda i, k: (i, 0))),
        scratch_shapes=[pltpu.VMEM((tm, N), jnp.float32)],
        compiler_params=pltpu.CompilerParams(
            dimension_semantics=("parallel", "arbitrary"),
            vmem_limit_bytes=_VMEM_LIMIT),
    )(x, w, residual, ln_w.reshape(1, N))


# ---------------------------------------------------------------------------
# gate_up matmul with fused SiLU(gate) * up epilogue
# ---------------------------------------------------------------------------
def _gate_up_silu_kernel(x_ref, wg_ref, wu_ref, o_ref, accg_ref, accu_ref):
    k = pl.program_id(2)

    @pl.when(k == 0)
    def _():
        accg_ref[...] = jnp.zeros_like(accg_ref)
        accu_ref[...] = jnp.zeros_like(accu_ref)

    x = x_ref[...]
    accg_ref[...] += jnp.dot(x, wg_ref[...], preferred_element_type=jnp.float32)
    accu_ref[...] += jnp.dot(x, wu_ref[...], preferred_element_type=jnp.float32)

    @pl.when(k == pl.num_programs(2) - 1)
    def _():
        g = accg_ref[...]
        o_ref[...] = (g * lax.logistic(g) * accu_ref[...]).astype(o_ref.dtype)


def pallas_gate_up_silu(x, wg, wu, out_dtype=jnp.bfloat16, *, tm, tn=512, tk=1024):
    M, K = x.shape
    K2, N = wg.shape
    assert K == K2 and wu.shape == wg.shape and M % tm == 0
    tn = _pick_dim_tile(N, tn)
    tk = _pick_dim_tile(K, tk)
    return pl.pallas_call(
        _gate_up_silu_kernel,
        out_shape=jax.ShapeDtypeStruct((M, N), out_dtype),
        grid=(M // tm, N // tn, K // tk),
        in_specs=[pl.BlockSpec((tm, tk), lambda i, j, k: (i, k)),
                  pl.BlockSpec((tk, tn), lambda i, j, k: (k, j)),
                  pl.BlockSpec((tk, tn), lambda i, j, k: (k, j))],
        out_specs=pl.BlockSpec((tm, tn), lambda i, j, k: (i, j)),
        scratch_shapes=[pltpu.VMEM((tm, tn), jnp.float32),
                        pltpu.VMEM((tm, tn), jnp.float32)],
        compiler_params=pltpu.CompilerParams(
            dimension_semantics=("parallel", "parallel", "arbitrary"),
            vmem_limit_bytes=_VMEM_LIMIT),
    )(x, wg, wu)


# ---------------------------------------------------------------------------
# RMSNorm / fused residual-add + RMSNorm (f32 stats, bf16 outputs)
# ---------------------------------------------------------------------------
def _rmsnorm_kernel(x_ref, w_ref, o_ref, *, eps):
    x = x_ref[...].astype(jnp.float32)
    var = jnp.mean(x * x, axis=-1, keepdims=True)
    o_ref[...] = (x * lax.rsqrt(var + eps)
                  * w_ref[...].astype(jnp.float32)).astype(o_ref.dtype)


def pallas_rmsnorm(x, w, eps, *, tm):
    M, N = x.shape
    assert M % tm == 0
    return pl.pallas_call(
        functools.partial(_rmsnorm_kernel, eps=eps),
        out_shape=jax.ShapeDtypeStruct((M, N), jnp.bfloat16),
        grid=(M // tm,),
        in_specs=[pl.BlockSpec((tm, N), lambda i: (i, 0)),
                  pl.BlockSpec((1, N), lambda i: (0, 0))],
        out_specs=pl.BlockSpec((tm, N), lambda i: (i, 0)),
        compiler_params=pltpu.CompilerParams(
            dimension_semantics=("parallel",), vmem_limit_bytes=_VMEM_LIMIT),
    )(x, w.reshape(1, N))


def _add_rmsnorm_kernel(x_ref, r_ref, w_ref, o_ref, nr_ref, *, eps):
    y = x_ref[...].astype(jnp.float32) + r_ref[...].astype(jnp.float32)
    nr_ref[...] = y.astype(nr_ref.dtype)
    var = jnp.mean(y * y, axis=-1, keepdims=True)
    o_ref[...] = (y * lax.rsqrt(var + eps)
                  * w_ref[...].astype(jnp.float32)).astype(o_ref.dtype)


def pallas_add_rmsnorm(x, residual, w, eps, *, tm):
    """vLLM RMSNorm(x, residual): returns (normed(x+residual), x+residual)."""
    M, N = x.shape
    assert M % tm == 0
    return pl.pallas_call(
        functools.partial(_add_rmsnorm_kernel, eps=eps),
        out_shape=(jax.ShapeDtypeStruct((M, N), jnp.bfloat16),
                   jax.ShapeDtypeStruct((M, N), jnp.bfloat16)),
        grid=(M // tm,),
        in_specs=[pl.BlockSpec((tm, N), lambda i: (i, 0)),
                  pl.BlockSpec((tm, N), lambda i: (i, 0)),
                  pl.BlockSpec((1, N), lambda i: (0, 0))],
        out_specs=(pl.BlockSpec((tm, N), lambda i: (i, 0)),
                   pl.BlockSpec((tm, N), lambda i: (i, 0))),
        compiler_params=pltpu.CompilerParams(
            dimension_semantics=("parallel",), vmem_limit_bytes=_VMEM_LIMIT),
    )(x, residual, w.reshape(1, N))


# ---------------------------------------------------------------------------
# Fused per-head RMSNorm (q_norm/k_norm) + neox RoPE, head grid axis.
# Reads directly out of the fused qkv tensor via a column-block offset.
# RoPE uses pltpu.roll (XLU) with full-width cos/sin (sign folded into sin).
# ---------------------------------------------------------------------------
def _norm_rope_kernel(x_ref, w_ref, cos_ref, sin_ref, o_ref, *, eps, half):
    x = x_ref[...].astype(jnp.float32)                       # [tm, hd]
    var = jnp.mean(x * x, axis=-1, keepdims=True)
    xn = x * lax.rsqrt(var + eps) * w_ref[...].astype(jnp.float32)
    rot = pltpu.roll(xn, half, 1)                            # [x2, x1]
    o_ref[...] = (xn * cos_ref[...] + rot * sin_ref[...]).astype(o_ref.dtype)


def pallas_norm_rope(qkv, w, cos, sin, *, n_heads, head_dim, head_block_off,
                     eps, tm):
    T, W = qkv.shape
    assert W % head_dim == 0 and T % tm == 0
    return pl.pallas_call(
        functools.partial(_norm_rope_kernel, eps=eps, half=head_dim // 2),
        out_shape=jax.ShapeDtypeStruct((T, n_heads * head_dim), jnp.bfloat16),
        grid=(T // tm, n_heads),
        in_specs=[
            pl.BlockSpec((tm, head_dim), lambda i, h: (i, head_block_off + h)),
            pl.BlockSpec((1, head_dim), lambda i, h: (0, 0)),
            pl.BlockSpec((tm, head_dim), lambda i, h: (i, 0)),
            pl.BlockSpec((tm, head_dim), lambda i, h: (i, 0)),
        ],
        out_specs=pl.BlockSpec((tm, head_dim), lambda i, h: (i, h)),
        compiler_params=pltpu.CompilerParams(
            dimension_semantics=("parallel", "parallel"),
            vmem_limit_bytes=_VMEM_LIMIT),
    )(qkv, w.reshape(1, head_dim), cos, sin)


# ---------------------------------------------------------------------------
# Causal flash attention, grouped by KV head (GQA): K/V resident per group,
# the `rep` query heads of the group are processed against it in-kernel.
# K/V index_map is clamped to the causal diagonal -> no DMA for skipped tiles.
# The softmax scale is pre-folded into q (via the q_norm weight).
# q: [T, nh*hd] (bf16), k: [T, nkv*hd] (bf16), v read from qkv via offset.
# ---------------------------------------------------------------------------
def _flash_attn_kernel(q_ref, k_ref, v_ref, o_ref, m_sc, l_sc, acc_sc,
                       *, rep, head_dim, tq, tkv):
    qi = pl.program_id(1)
    ki = pl.program_id(2)

    @pl.when(ki == 0)
    def _():
        m_sc[...] = jnp.full_like(m_sc, -jnp.inf)
        l_sc[...] = jnp.zeros_like(l_sc)
        acc_sc[...] = jnp.zeros_like(acc_sc)

    def process(masked):
        k = k_ref[...]                                        # [tkv, hd]
        v = v_ref[...]
        if masked:
            rows = lax.broadcasted_iota(jnp.int32, (tq, tkv), 0)
            cols = lax.broadcasted_iota(jnp.int32, (tq, tkv), 1)
            tri = rows >= cols                                # q_start == kv_start
        for r in range(rep):
            lo = r * head_dim
            q = q_ref[:, lo:lo + head_dim]
            s = lax.dot_general(q, k, (((1,), (1,)), ((), ())),
                                preferred_element_type=jnp.float32)  # [tq, tkv]
            if masked:
                s = jnp.where(tri, s, jnp.float32(-1e30))
            m_prev = m_sc[:, r:r + 1]
            m_new = jnp.maximum(m_prev, jnp.max(s, axis=-1, keepdims=True))
            alpha = jnp.exp(m_prev - m_new)
            p = jnp.exp(s - m_new)
            l_sc[:, r:r + 1] = alpha * l_sc[:, r:r + 1] + jnp.sum(
                p, axis=-1, keepdims=True)
            acc_sc[:, lo:lo + head_dim] = (
                alpha * acc_sc[:, lo:lo + head_dim]
                + jnp.dot(p.astype(v.dtype), v,
                          preferred_element_type=jnp.float32))
            m_sc[:, r:r + 1] = m_new

    # Strictly-below-diagonal tile: no mask needed.
    @pl.when(ki < qi)
    def _():
        process(False)

    # Diagonal-straddling tile (tq == tkv => only ki == qi): local triangular mask.
    @pl.when(ki == qi)
    def _():
        process(True)

    @pl.when(ki == pl.num_programs(2) - 1)
    def _():
        for r in range(rep):
            lo = r * head_dim
            inv = pl.reciprocal(l_sc[:, r:r + 1], approx=True)
            o_ref[:, lo:lo + head_dim] = (
                acc_sc[:, lo:lo + head_dim] * inv).astype(o_ref.dtype)


def pallas_flash_attention(q, k, qkv, num_heads, num_kv_heads, head_dim,
                           *, tq, tkv):
    T = q.shape[0]
    rep = num_heads // num_kv_heads
    assert tq == tkv and T % tq == 0          # diagonal-tile masking relies on tq==tkv
    v_off = num_heads + num_kv_heads          # v column-block offset inside fused qkv
    kernel = functools.partial(_flash_attn_kernel, rep=rep, head_dim=head_dim,
                               tq=tq, tkv=tkv)
    return pl.pallas_call(
        kernel,
        out_shape=jax.ShapeDtypeStruct((T, num_heads * head_dim), jnp.bfloat16),
        grid=(num_kv_heads, T // tq, T // tkv),
        in_specs=[
            pl.BlockSpec((tq, rep * head_dim), lambda g, qi, ki: (qi, g)),
            # clamp to the diagonal: skipped tiles keep the same block -> no DMA
            pl.BlockSpec((tkv, head_dim),
                         lambda g, qi, ki: (jnp.minimum(ki, qi), g)),
            pl.BlockSpec((tkv, head_dim),
                         lambda g, qi, ki: (jnp.minimum(ki, qi), v_off + g)),
        ],
        out_specs=pl.BlockSpec((tq, rep * head_dim), lambda g, qi, ki: (qi, g)),
        scratch_shapes=[pltpu.VMEM((tq, rep), jnp.float32),
                        pltpu.VMEM((tq, rep), jnp.float32),
                        pltpu.VMEM((tq, rep * head_dim), jnp.float32)],
        compiler_params=pltpu.CompilerParams(
            dimension_semantics=("parallel", "parallel", "arbitrary"),
            vmem_limit_bytes=_VMEM_LIMIT),
    )(q, k, qkv)


# ---------------------------------------------------------------------------
# Qwen3DecoderLayer forward
# ---------------------------------------------------------------------------
def qwen3_decoder_layer(positions, hidden_states, residual, params, cfg):
    nh = cfg["num_heads"]
    nkv = cfg["num_kv_heads"]
    hd = cfg["head_dim"]
    eps = cfg["rms_norm_eps"]
    theta = cfg["rope_theta"]
    scale = float(hd) ** -0.5
    T = hidden_states.shape[0]

    # --- token-axis tiling: pad T up to a tile multiple (never full-dim blocks)
    tm = _token_tile(T)
    T_pad = _round_up(T, tm)
    if T_pad != T:
        pad = T_pad - T
        hidden_states = jnp.pad(hidden_states, ((0, pad), (0, 0)))
        positions = jnp.pad(positions, ((0, pad),))
        if residual is not None:
            residual = jnp.pad(residual, ((0, pad), (0, 0)))

    # ----- input layernorm (optionally fused with residual add) -----
    if residual is None:
        residual_p = hidden_states.astype(jnp.bfloat16)
        x = pallas_rmsnorm(hidden_states, params["input_ln_w"], eps, tm=tm)
    else:
        x, residual_p = pallas_add_rmsnorm(hidden_states, residual,
                                           params["input_ln_w"], eps, tm=tm)

    # ----- self attention -----
    qkv = pallas_matmul(x, params["qkv_w_t"], out_dtype=jnp.bfloat16, tm=tm)

    # rotary tables: full head_dim width, rotate-half sign folded into sin
    half = hd // 2
    inv_freq = 1.0 / (theta ** (jnp.arange(0, hd, 2, dtype=jnp.float32) / hd))
    freqs = positions.astype(jnp.float32)[:, None] * inv_freq[None, :]  # [T, hd/2]
    cos = jnp.cos(freqs)
    sin = jnp.sin(freqs)
    cos_full = jnp.concatenate([cos, cos], axis=-1)                     # [T, hd]
    sin_full = jnp.concatenate([-sin, sin], axis=-1)

    # fused per-head q/k RMSNorm + RoPE, reading straight out of the qkv tensor;
    # attention softmax scale folded into the q-norm weight (free).
    q_r = pallas_norm_rope(qkv, params["q_norm_w"] * scale, cos_full, sin_full,
                           n_heads=nh, head_dim=hd, head_block_off=0,
                           eps=eps, tm=tm)
    k_r = pallas_norm_rope(qkv, params["k_norm_w"], cos_full, sin_full,
                           n_heads=nkv, head_dim=hd, head_block_off=nh,
                           eps=eps, tm=tm)

    # causal GQA flash attention; V is read directly from qkv via column offset
    o = pallas_flash_attention(q_r, k_r, qkv, nh, nkv, hd, tq=tm, tkv=tm)

    # ----- o_proj fused with residual add + post_attention layernorm -----
    x2, residual_p = pallas_matmul_add_rmsnorm(o, params["o_w_t"], residual_p,
                                               params["post_ln_w"], eps, tm=tm)

    # ----- MLP: gate_up matmul with fused SiLU*mul epilogue, then down proj -----
    act = pallas_gate_up_silu(x2, params["gate_w_t"], params["up_w_t"], tm=tm)
    out = pallas_matmul(act, params["down_w_t"], out_dtype=jnp.bfloat16, tm=tm)
    # TODO(synk): the next layer's input add+RMSNorm could be fused into this
    # down_proj epilogue (cross-layer), saving one more [T, H] round trip.
    # TODO(synk): KV-cache write-back / paged decode path not implemented (prefill only).

    if T_pad != T:
        out = out[:T]
        residual_p = residual_p[:T]
    return out, residual_p


# ---------------------------------------------------------------------------
# pure-JAX reference (mirrors the kernel dtype strategy) for validation
# ---------------------------------------------------------------------------
def _ref_rms(x32, w, eps):
    var = jnp.mean(x32 * x32, axis=-1, keepdims=True)
    return x32 * lax.rsqrt(var + eps) * w.astype(jnp.float32)


def qwen3_layer_reference(positions, hidden_states, residual, params, cfg):
    nh, nkv, hd = cfg["num_heads"], cfg["num_kv_heads"], cfg["head_dim"]
    eps, theta = cfg["rms_norm_eps"], cfg["rope_theta"]
    rep = nh // nkv
    scale = float(hd) ** -0.5
    T = hidden_states.shape[0]

    if residual is None:
        residual = hidden_states.astype(jnp.bfloat16)
        y = hidden_states.astype(jnp.float32)
    else:
        y = hidden_states.astype(jnp.float32) + residual.astype(jnp.float32)
        residual = y.astype(jnp.bfloat16)
    x = _ref_rms(y, params["input_ln_w"], eps).astype(jnp.bfloat16)

    qkv = jnp.dot(x, params["qkv_w_t"],
                  preferred_element_type=jnp.float32).astype(jnp.bfloat16)
    q = qkv[:, :nh * hd].reshape(T, nh, hd)
    k = qkv[:, nh * hd:(nh + nkv) * hd].reshape(T, nkv, hd)
    v = qkv[:, (nh + nkv) * hd:].reshape(T, nkv, hd)

    inv_freq = 1.0 / (theta ** (jnp.arange(0, hd, 2, dtype=jnp.float32) / hd))
    freqs = positions.astype(jnp.float32)[:, None] * inv_freq[None, :]
    cos = jnp.cos(freqs)[:, None, :]
    sin = jnp.sin(freqs)[:, None, :]

    def norm_rope(xh, w, s):
        xn = _ref_rms(xh.astype(jnp.float32), w, eps) * s
        x1, x2 = xn[..., :hd // 2], xn[..., hd // 2:]
        return jnp.concatenate([x1 * cos - x2 * sin, x2 * cos + x1 * sin],
                               axis=-1).astype(jnp.bfloat16)

    qr = norm_rope(q, params["q_norm_w"], scale)
    kr = jnp.repeat(norm_rope(k, params["k_norm_w"], 1.0), rep, axis=1)
    vr = jnp.repeat(v, rep, axis=1)

    s = jnp.einsum("qhd,khd->hqk", qr, kr, preferred_element_type=jnp.float32)
    causal = positions[:, None] >= positions[None, :]
    s = jnp.where(causal[None, :, :], s, jnp.float32(-1e30))
    m = jnp.max(s, axis=-1, keepdims=True)
    p = jnp.exp(s - m)
    l = jnp.sum(p, axis=-1, keepdims=True)
    o = jnp.einsum("hqk,khd->qhd", p.astype(jnp.bfloat16), vr,
                   preferred_element_type=jnp.float32)
    o = (o / jnp.swapaxes(l, 0, 1)).astype(jnp.bfloat16).reshape(T, nh * hd)

    attn = jnp.dot(o, params["o_w_t"], preferred_element_type=jnp.float32)
    y2 = attn + residual.astype(jnp.float32)
    residual = y2.astype(jnp.bfloat16)
    x2 = _ref_rms(y2, params["post_ln_w"], eps).astype(jnp.bfloat16)

    g = jnp.dot(x2, params["gate_w_t"], preferred_element_type=jnp.float32)
    u = jnp.dot(x2, params["up_w_t"], preferred_element_type=jnp.float32)
    act = (g * lax.logistic(g) * u).astype(jnp.bfloat16)
    out = jnp.dot(act, params["down_w_t"],
                  preferred_element_type=jnp.float32).astype(jnp.bfloat16)
    return out, residual


def _max_abs_diff(a, b):
    return float(jnp.max(jnp.abs(a.astype(jnp.float32) - b.astype(jnp.float32))))


# ---------------------------------------------------------------------------
# deterministic parameter / input construction + run
# ---------------------------------------------------------------------------
def make_params(cfg, key):
    H = cfg["hidden_size"]
    nh, nkv, hd = cfg["num_heads"], cfg["num_kv_heads"], cfg["head_dim"]
    inter = cfg["intermediate_size"]
    q_size, kv_size = nh * hd, nkv * hd
    ks = jax.random.split(key, 5)
    s = 0.05

    def w(k, shape):  # weights stored pre-transposed [in, out], bf16 for the MXU
        return (s * jax.random.normal(k, shape, jnp.float32)).astype(jnp.bfloat16)

    return {
        "qkv_w_t": w(ks[0], (H, q_size + 2 * kv_size)),
        "o_w_t": w(ks[1], (q_size, H)),
        "gate_w_t": w(ks[2], (H, inter)),
        "up_w_t": w(ks[3], (H, inter)),
        "down_w_t": w(ks[4], (inter, H)),
        # RMSNorm weights init to ones (PyTorch default), kept f32
        "input_ln_w": jnp.ones((H,), jnp.float32),
        "post_ln_w": jnp.ones((H,), jnp.float32),
        "q_norm_w": jnp.ones((hd,), jnp.float32),
        "k_norm_w": jnp.ones((hd,), jnp.float32),
    }


if __name__ == "__main__":
    cfg = dict(
        hidden_size=256,
        num_heads=4,
        num_kv_heads=2,
        head_dim=128,          # real Qwen3 head_dim -> lane-aligned blocks
        intermediate_size=512,
        rms_norm_eps=1e-6,
        rope_theta=1000000.0,
    )
    T = 16

    key = jax.random.PRNGKey(0)
    kp, kx = jax.random.split(key)
    params = make_params(cfg, kp)
    hidden_states = jax.random.normal(kx, (T, cfg["hidden_size"]), jnp.float32)
    positions = jnp.arange(T, dtype=jnp.int32)

    # first layer (residual=None branch), then a second call exercising the fused
    # add+norm residual branch.
    out1, res1 = qwen3_decoder_layer(positions, hidden_states, None, params, cfg)
    out2, res2 = qwen3_decoder_layer(positions, out1, res1, params, cfg)
    jax.block_until_ready((out1, res1, out2, res2))

    # layer-by-layer reference check (reference consumes the kernel's own
    # layer-1 outputs so differences do not compound).
    rout1, rres1 = qwen3_layer_reference(positions, hidden_states, None, params, cfg)
    rout2, rres2 = qwen3_layer_reference(positions, out1, res1, params, cfg)
    err = max(_max_abs_diff(out1, rout1), _max_abs_diff(res1, rres1),
              _max_abs_diff(out2, rout2), _max_abs_diff(res2, rres2))

    H = cfg["hidden_size"]
    assert out1.shape == (T, H) and res1.shape == (T, H)
    assert out2.shape == (T, H) and res2.shape == (T, H)
    assert bool(jnp.all(jnp.isfinite(out2.astype(jnp.float32))))
    assert err < 0.15, f"max abs diff vs reference = {err}"
    print("KERNEL_OK")
</pallas_src>

<mosaic_0001>
module attributes {stable_mosaic.version = 11 : i64} {
  func.func @_rmsnorm_kernel(%arg0: i32, %arg1: memref<8x256xf32, #tpu.memory_space<vmem>>, %arg2: memref<1x256xf32, #tpu.memory_space<vmem>>, %arg3: memref<8x256xbf16, #tpu.memory_space<vmem>>) attributes {dimension_semantics = [#tpu.dimension_semantics<parallel>], iteration_bounds = array<i64: 2>, scalar_prefetch = 0 : i64, scratch_operands = 0 : i64, tpu.core_type = #tpu.core_type<tc>, window_params = [{transform_indices = @transform_0, window_bounds = array<i64: 8, 256>}, {pipeline_mode = #tpu.pipeline_mode<synchronous>, transform_indices = @transform_1, window_bounds = array<i64: 1, 256>}, {transform_indices = @transform_2, window_bounds = array<i64: 8, 256>}]} {
    %c0 = arith.constant 0 : index
    %c0_0 = arith.constant 0 : index
    %0 = vector.load %arg1[%c0, %c0_0] : memref<8x256xf32, #tpu.memory_space<vmem>>, vector<8x256xf32>
    %1 = arith.mulf %0, %0 : vector<8x256xf32>
    %cst = arith.constant dense<0.000000e+00> : vector<8xf32>
    %2 = vector.multi_reduction <add>, %1, %cst [1] : vector<8x256xf32> to vector<8xf32>
    %3 = vector.shape_cast %2 : vector<8xf32> to vector<8x1xf32>
    %cst_1 = arith.constant 2.560000e+02 : f32
    %4 = vector.broadcast %cst_1 : f32 to vector<8x1xf32>
    %5 = arith.divf %3, %4 : vector<8x1xf32>
    %cst_2 = arith.constant 9.99999997E-7 : f32
    %6 = vector.broadcast %cst_2 : f32 to vector<8x1xf32>
    %7 = arith.addf %5, %6 : vector<8x1xf32>
    %8 = math.rsqrt %7 : vector<8x1xf32>
    %9 = vector.broadcast %8 : vector<8x1xf32> to vector<8x256xf32>
    %10 = arith.mulf %0, %9 : vector<8x256xf32>
    %c0_3 = arith.constant 0 : index
    %c0_4 = arith.constant 0 : index
    %11 = vector.load %arg2[%c0_3, %c0_4] : memref<1x256xf32, #tpu.memory_space<vmem>>, vector<1x256xf32>
    %12 = vector.broadcast %11 : vector<1x256xf32> to vector<8x256xf32>
    %13 = arith.mulf %10, %12 : vector<8x256xf32>
    %14 = arith.truncf %13 : vector<8x256xf32> to vector<8x256xbf16>
    %c0_5 = arith.constant 0 : index
    %c0_6 = arith.constant 0 : index
    %15 = vector.load %arg3[%c0_5, %c0_6] : memref<8x256xbf16, #tpu.memory_space<vmem>>, vector<8x256xbf16>
    tpu.vector_store %arg3[%c0_5, %c0_6], %14 {strides = array<i32>} : memref<8x256xbf16, #tpu.memory_space<vmem>>, vector<8x256xbf16>,
    return
  }
  func.func @transform_0(%arg0: i32) -> (i32, i32) {
    %c0_i32 = arith.constant 0 : i32
    %c0_i32_0 = arith.constant 0 : i32
    return %arg0, %c0_i32 : i32, i32
  }
  func.func @transform_1(%arg0: i32) -> (i32, i32) {
    %c0_i32 = arith.constant 0 : i32
    %c0_i32_0 = arith.constant 0 : i32
    %c0_i32_1 = arith.constant 0 : i32
    return %c0_i32, %c0_i32_0 : i32, i32
  }
  func.func @transform_2(%arg0: i32) -> (i32, i32) {
    %c0_i32 = arith.constant 0 : i32
    %c0_i32_0 = arith.constant 0 : i32
    return %arg0, %c0_i32 : i32, i32
  }
}

</mosaic_0001>

<llo_original>
// kernel: tpu_custom_call.1
$region0: #{tpu_custom_call.1}
  #allocation0 [shape = 'u32[]', space=smem, size = 0x4, offset = 0x4, fixed_abs, tag = 'smem constant byte address 0x4 - core index']
  #allocation1 [shape = 'u32[144,128]{1,0:T(1,128)}', space=vmem, size = 0x12000, scoped, tag = 'internal scratch']
  %s0 = inlined_call_operand.hbm [shape: f32[16,256], index: 0, kind: input, shape index: {}]
  %s1 = inlined_call_operand.vmem [shape: f32[1,256], index: 1, kind: input, shape index: {}]
  %s2 = inlined_call_operand.hbm [shape: bf16[16,256], index: 2, kind: output, shape index: {}]
  %s3 = sld [smem:[#allocation0]]
  $region45: #{tpu_custom_call.1} parent=0
    _
  %s5 = ssub.s32 1, %s3
  %s6 = scalar_select 0, %s5, %s3
  $region1: #{tpu_custom_call.1} parent=0
    #allocation2 [shape = 'u8[16384]{0}', space=vmem, size = 0x4000, scoped, tag = 'input window, operand 0']
    #allocation3 [shape = 's32[2]{0}', space=sflag, size = 0x8, scoped, tag = 'scoped memory for tpu_custom_call.1']
    #allocation4 [shape = 's32[2]{0}', space=sflag, size = 0x8, scoped, tag = 'scoped memory for tpu_custom_call.1']
    #allocation5 [shape = 'u8[8192]{0}', space=vmem, size = 0x2000, scoped, tag = 'output window, operand 0']
    %7 = vsyncpa [#allocation3], 0
    %s8 = scalar_lea.sflag [#allocation3], 1
    %9 = vsyncpa %s8, 0
    %10 = vsyncpa [#allocation4], 0
    %s11 = scalar_lea.sflag [#allocation4], 1
    %12 = vsyncpa %s11, 0
    loop: start=0, step=1, limit=4
    $region2: #{tpu_custom_call.1} parent=1 // loop_pre_header
      _
    $region3: #{tpu_custom_call.1} parent=1 // loop_header
      %s14 = sphi 0, %s18
      %p15 = scmp.ge.s32.totalorder %s14, 4
      %s24 = sphi 0, %s26
      %s27 = sphi 0, %s24
      %s28 = sphi 0, %s27
      %s44 = sphi 0, %s28
      %s48 = sphi 0, %s48
      %s50 = sphi 0, %s48
      %s51 = sphi 0, %s50
      %s65 = sphi 0, %s51
      %s71 = sphi 0, %s73
      %s74 = sphi 0, %s71
      %s75 = sphi 0, %s74
      %s91 = sphi 0, %s75
    $region4: #{tpu_custom_call.1} parent=1 // loop_header_branch
      %17 = sbr.rel (%p15) target = $region8
    $region5: #{tpu_custom_call.1} parent=1 // loop_body
      %s19 = ssub.s32 %s14, 1
      %s20 = ssub.s32 %s14, 2
      %s21 = sadd.s32 %s14, 1
      %s22 = ssub.s32 %s14, %s21
      %p23 = scmp.eq.s32.totalorder %s22, 0
      %s25 = sadd.s32 %s24, 1
      %s26 = scalar_select %p23, %s24, %s25
      %p29 = pneg %p23
      %p30 = scmp.eq.s32.totalorder %s14, 1
      %p31 = por %p29, %p30
      %p32 = scmp.ne.s32.totalorder %s24, %s27
      %p33 = scmp.eq.s32.totalorder %s14, 0
      %p34 = por %p32, %p33
      %p35 = scmp.ne.s32.totalorder %s24, %s27
      %p36 = scmp.eq.s32.totalorder %s19, 1
      %p37 = por %p35, %p36
      %p38 = scmp.ne.s32.totalorder %s27, %s28
      %p39 = scmp.eq.s32.totalorder %s19, 0
      %p40 = por %p38, %p39
      %p41 = scmp.ne.s32.totalorder %s27, %s28
      %p42 = scmp.eq.s32.totalorder %s20, 1
      %p43 = por %p41, %p42
      %p45 = scmp.ne.s32.totalorder %s28, %s44
      %p46 = scmp.eq.s32.totalorder %s20, 0
      %p47 = por %p45, %p46
      %s49 = sadd.s32 %s48, 1
      %p52 = scmp.eq.s32.totalorder %s14, 1
      %p53 = scmp.ne.s32.totalorder %s48, %s50
      %p54 = scmp.eq.s32.totalorder %s14, 0
      %p55 = por %p53, %p54
      %p56 = scmp.ne.s32.totalorder %s48, %s50
      %p57 = scmp.eq.s32.totalorder %s19, 1
      %p58 = por %p56, %p57
      %p59 = scmp.ne.s32.totalorder %s50, %s51
      %p60 = scmp.eq.s32.totalorder %s19, 0
      %p61 = por %p59, %p60
      %p62 = scmp.ne.s32.totalorder %s50, %s51
      %p63 = scmp.eq.s32.totalorder %s20, 1
      %p64 = por %p62, %p63
      %p66 = scmp.ne.s32.totalorder %s51, %s65
      %p67 = scmp.eq.s32.totalorder %s20, 0
      %p68 = por %p66, %p67
      %s69 = ssub.s32 %s14, %s21
      %p70 = scmp.eq.s32.totalorder %s69, 0
      %s72 = sadd.s32 %s71, 1
      %s73 = scalar_select %p70, %s71, %s72
      %p76 = pneg %p70
      %p77 = scmp.eq.s32.totalorder %s14, 1
      %p78 = por %p76, %p77
      %p79 = scmp.ne.s32.totalorder %s71, %s74
      %p80 = scmp.eq.s32.totalorder %s14, 0
      %p81 = por %p79, %p80
      %p82 = scmp.ne.s32.totalorder %s71, %s74
      %p83 = scmp.eq.s32.totalorder %s19, 1
      %p84 = por %p82, %p83
      %p85 = scmp.ne.s32.totalorder %s74, %s75
      %p86 = scmp.eq.s32.totalorder %s19, 0
      %p87 = por %p85, %p86
      %p88 = scmp.ne.s32.totalorder %s74, %s75
      %p89 = scmp.eq.s32.totalorder %s20, 1
      %p90 = por %p88, %p89
      %p92 = scmp.ne.s32.totalorder %s75, %s91
      %p93 = scmp.eq.s32.totalorder %s20, 0
      %p94 = por %p92, %p93
      %p95 = scmp.le.s32.totalorder 1, %s14
      %p96 = scmp.lt.s32.totalorder %s14, 3
      %p97 = pnand %p95, %p96
      %p98 = pneg %p97
      // Predicated region
      $region9: #{tpu_custom_call.1} parent=5 // pred_check
        _
      $region10: #{tpu_custom_call.1} parent=5 // pred_check_branch
        %100 = sbr.rel (%p97) target = $region12
      $region11: #{tpu_custom_call.1} parent=5 // pred_region
        %s101 = ssub.s32 %s14, 1
        // Predicated region
        $region13: #{tpu_custom_call.1} parent=11 // pred_check
          %p102 = pneg %p61
        $region14: #{tpu_custom_call.1} parent=11 // pred_check_branch
          %104 = sbr.rel (%p102) target = $region16
        $region15: #{tpu_custom_call.1} parent=11 // pred_region
          _
        $region16: #{tpu_custom_call.1} parent=11 // pred_fallthru
          _
      $region12: #{tpu_custom_call.1} parent=5 // pred_fallthru
        _
      %p105 = scmp.lt.s32.totalorder %s14, 2
      // Predicated region
      $region17: #{tpu_custom_call.1} parent=5 // pred_check
        %p106 = pneg %p105
      $region18: #{tpu_custom_call.1} parent=5 // pred_check_branch
        %108 = sbr.rel (%p106) target = $region20
      $region19: #{tpu_custom_call.1} parent=5 // pred_region
        // Predicated region
        $region21: #{tpu_custom_call.1} parent=19 // pred_check
          %p109 = pneg %p34
        $region22: #{tpu_custom_call.1} parent=19 // pred_check_branch
          %111 = sbr.rel (%p109) target = $region24
        $region23: #{tpu_custom_call.1} parent=19 // pred_region
          %s112 = sand.u32 %s24, 1
          %s113 = scalar_lea.sflag [#allocation3], %s112
          %s114 = sand.u32 %s24, 1
          %s115 = smul.addr %s114, 16
          %s116 = scalar_lea.vmem [#allocation2], %s115
          %s118 = ssub.s32 256, 256
          %119 = vsyncadd %s113, %s118
          %s120 = smul.addr %s14, 2
          %s121 = smul.addr %s120, 128
          %s122 = scalar_lea.hbm %s0, %s121
          %s124 = sshll.u32 %s116, 4
          %s125 = int_to_ptr.vmem [resolvable:$true] %s124
          %127 = dma.hbm_to_vmem [thread:$0]  %s122, 256, %s125, %s113
        $region24: #{tpu_custom_call.1} parent=19 // pred_fallthru
          _
      $region20: #{tpu_custom_call.1} parent=5 // pred_fallthru
        _
      %p128 = scmp.le.s32.totalorder 1, %s14
      %p129 = scmp.lt.s32.totalorder %s14, 3
      %p130 = pnand %p128, %p129
      %p131 = pneg %p130
      // Predicated region
      $region25: #{tpu_custom_call.1} parent=5 // pred_check
        _
      $region26: #{tpu_custom_call.1} parent=5 // pred_check_branch
        %133 = sbr.rel (%p130) target = $region28
      $region27: #{tpu_custom_call.1} parent=5 // pred_region
        %s134 = ssub.s32 %s14, 1
        %s135 = sand.u32 %s27, 1
        %s136 = scalar_lea.sflag [#allocation3], %s135
        %s137 = sand.u32 %s27, 1
        %s138 = smul.addr %s137, 16
        %s139 = scalar_lea.vmem [#allocation2], %s138
        // Predicated region
        $region29: #{tpu_custom_call.1} parent=27 // pred_check
          %p140 = pneg %p40
        $region30: #{tpu_custom_call.1} parent=27 // pred_check_branch
          %142 = sbr.rel (%p140) target = $region32
        $region31: #{tpu_custom_call.1} parent=27 // pred_region
          %143 = dma.done %s136, 256
        $region32: #{tpu_custom_call.1} parent=27 // pred_fallthru
          _
        %s144 = sand.u32 %s27, 1
        %s145 = scalar_lea.sflag [#allocation3], %s144
        %s146 = sand.u32 %s27, 1
        %s147 = smul.addr %s146, 16
        %s148 = scalar_lea.vmem [#allocation2], %s147
        %p149 = pneg %p40
        %p150 = pneg %p37
        %p151 = pneg %p61
        %p152 = pneg %p58
        %p153 = pneg %p87
        %p154 = pneg %p84
        %s155 = sand.u32 %s74, 1
        %s156 = scalar_lea.sflag [#allocation4], %s155
        %s157 = sand.u32 %s74, 1
        %s158 = smul.addr %s157, 8
        %s159 = scalar_lea.vmem [#allocation5], %s158
        %v160 = vld [vmem:[%s139] sm:$0xff]
        %v161 = vld [vmem:[%s139 + $0x8] sm:$0xff]
        %v162 = vmul.f32 %v160, %v160
        %v163 = vmul.f32 %v161, %v161
        %v164 = vadd.f32 %v162, %v163
        %165 = vadd.xlane.f32.xlu0 %v164
        %v166 = vpop.xlane.xlu0 %165
        %v167 = vrcp.pop 256.0
        %v168 = vmul.f32 %v166, %v167
        %v169 = vadd.f32 %v168, 1e-06
        %v170 = vrsqrt.pop %v169
        %v171 = vmul.f32 %v160, %v170
        %v172 = vmul.f32 %v161, %v170
        %v173 = vld [vmem:[%s1] sm:$0x3]
        %v175 = vlaneseq
        %v176 = vshrl.u32 %v175, 7
        %v177 = vsub.s32 0, %v176
        %v178 = vrot.slane %v173, %v177
        %v179 = vlaneseq
        %v180 = vshrl.u32 %v179, 7
        %v181 = vsub.s32 1, %v180
        %v182 = vrot.slane %v173, %v181
        %v185 = vmul.f32 %v171, %v178
        %v186 = vmul.f32 %v172, %v182
        %v187 = vpack.c.bf16 %v185, %v185
        %v188 = vpack.c.bf16 %v186, %v186
        %v191 = vunpack.c.l.b16 %v187
        %v192 = vunpack.c.l.b16 %v188
        %v193 = vpack.c.b16 %v192, %v191
        %195 = vst [vmem:[%s159] sm:$0xff] %v193
        %s196 = sand.u32 %s74, 1
        %s197 = scalar_lea.sflag [#allocation4], %s196
        %s198 = sand.u32 %s74, 1
        %s199 = smul.addr %s198, 8
        %s200 = scalar_lea.vmem [#allocation5], %s199
        // Predicated region
        $region33: #{tpu_custom_call.1} parent=27 // pred_check
          %p201 = pneg %p84
        $region34: #{tpu_custom_call.1} parent=27 // pred_check_branch
          %203 = sbr.rel (%p201) target = $region36
        $region35: #{tpu_custom_call.1} parent=27 // pred_region
          %s205 = ssub.s32 128, 128
          %206 = vsyncadd %s197, %s205
          %s207 = smul.addr %s19, 2
          %s208 = smul.addr %s207, 64
          %s209 = scalar_lea.hbm %s2, %s208
          %s211 = sshll.u32 %s200, 4
          %s212 = int_to_ptr.vmem [resolvable:$true] %s211
          %214 = dma.vmem_to_hbm [thread:$0]  %s212, 128, %s209, %s197
        $region36: #{tpu_custom_call.1} parent=27 // pred_fallthru
          _
      $region28: #{tpu_custom_call.1} parent=5 // pred_fallthru
        _
      %p215 = scmp.le.s32.totalorder 2, %s14
      // Predicated region
      $region37: #{tpu_custom_call.1} parent=5 // pred_check
        %p216 = pneg %p215
      $region38: #{tpu_custom_call.1} parent=5 // pred_check_branch
        %218 = sbr.rel (%p216) target = $region40
      $region39: #{tpu_custom_call.1} parent=5 // pred_region
        %s219 = ssub.s32 %s14, 2
        // Predicated region
        $region41: #{tpu_custom_call.1} parent=39 // pred_check
          %p220 = pneg %p90
        $region42: #{tpu_custom_call.1} parent=39 // pred_check_branch
          %222 = sbr.rel (%p220) target = $region44
        $region43: #{tpu_custom_call.1} parent=39 // pred_region
          %s223 = sand.u32 %s75, 1
          %s224 = scalar_lea.sflag [#allocation4], %s223
          %s225 = sand.u32 %s75, 1
          %s226 = smul.addr %s225, 8
          %s227 = scalar_lea.vmem [#allocation5], %s226
          %228 = dma.done %s224, 128
        $region44: #{tpu_custom_call.1} parent=39 // pred_fallthru
          _
      $region40: #{tpu_custom_call.1} parent=5 // pred_fallthru
        _
    $region6: #{tpu_custom_call.1} parent=1 // loop_footer
      %s18 = sadd.s32 1, %s14
    $region7: #{tpu_custom_call.1} parent=1 // loop_footer_branch
      %13 = sbr.rel target = $region3
    $region8: #{tpu_custom_call.1} parent=1 // loop_exit
      _
    %229 = vsyncpa [#allocation3], 1
    %s230 = scalar_lea.sflag [#allocation3], 1
    %231 = vsyncpa %s230, 1
    %232 = vsyncpa [#allocation4], 1
    %s233 = scalar_lea.sflag [#allocation4], 1
    %234 = vsyncpa %s233, 1

</llo_original>
